<compile_context>
chip_gen: v7x
topology: tpu7x:2x2x1
jax: 0.10.0
libtpu: 0.0.40
codegen_flags: <defaults>
</compile_context>

<pallas_src>
import functools
import numpy as np

import jax
import jax.numpy as jnp
from jax.experimental import pallas as pl
from jax.experimental.pallas import tpu as pltpu


# ----------------------------- parameters -----------------------------------
# LSNNParameters defaults (deterministic scalar hyper-parameters; the module
# has no trainable weights).
LSNN_PARAMS = dict(
    tau_syn_inv=1.0 / 5e-3,   # 200.0
    tau_mem_inv=1.0 / 1e-2,   # 100.0
    tau_adapt_inv=1.0 / 700.0,
    v_leak=0.0,
    v_th=1.0,
    v_reset=0.0,
    beta=1.8,
)
DT = 0.001

_LANES = 512            # lane-dense slab width (large multiple of 128)
_MAX_TILE_ROWS = 512    # 512*512*4B = 1 MiB/array block; 8 arrays x 2 bufs = 16 MiB


def _round_up(a, m):
    return (a + m - 1) // m * m


# ------------------------------- kernel --------------------------------------
def _lsnn_kernel(x_ref, v_ref, i_ref, b_ref,
                 z_ref, v_out_ref, i_out_ref, b_out_ref,
                 *, dt, tau_syn_inv, tau_mem_inv, tau_adapt_inv,
                 v_leak, v_th, v_reset, beta):
    x = x_ref[...]
    v = v_ref[...]
    i = i_ref[...]
    b = b_ref[...]

    # Euler decay steps (dt * tau_* products are folded to constants at trace).
    v_decayed = v + dt * tau_mem_inv * ((v_leak - v) + i)
    i_decayed = i - dt * tau_syn_inv * i
    b_decayed = b + dt * tau_adapt_inv * (v_th - b)

    # Spike: forward pass of the surrogate threshold = heaviside.
    spike = (v_decayed - b_decayed) > 0.0

    z_ref[...] = spike.astype(jnp.float32)
    v_out_ref[...] = jnp.where(spike, v_reset, v_decayed)
    i_out_ref[...] = i_decayed + x
    b_out_ref[...] = jnp.where(spike, b_decayed + tau_adapt_inv * beta, b_decayed)


# ------------------------------ wrapper ---------------------------------------
def lsnn_feed_forward_step(x, v, i, b, *, p=LSNN_PARAMS, dt=DT):
    """One LSNN feedforward Euler step. x, v, i, b: (batch, *shape) arrays."""
    orig_shape = x.shape
    total = int(np.prod(orig_shape)) if x.ndim else 1

    lanes = _LANES
    rows = max(-(-total // lanes), 1)

    if rows <= 8:
        # Tiny slab: one block == full array (no (8,128) requirement, no
        # row padding, single grid step).
        tile_rows = rows
    else:
        # Tiled path: blocks of (tile_rows, 512) with tile_rows % 8 == 0 and
        # >= 2 grid steps so megacore (v7x) can split the work.
        rows = _round_up(rows, 8)
        n_tiles = max(2, -(-rows // _MAX_TILE_ROWS))
        tile_rows = _round_up(-(-rows // n_tiles), 8)
        rows = _round_up(rows, tile_rows)

    padded = rows * lanes
    pad_amt = padded - total

    def prep(a):
        a = a.reshape(-1)
        if a.dtype != jnp.float32:
            a = a.astype(jnp.float32)
        if pad_amt:
            a = jnp.pad(a, (0, pad_amt))        # tail-only padding
        return a.reshape(rows, lanes)

    x2, v2, i2, b2 = prep(x), prep(v), prep(i), prep(b)

    grid = (rows // tile_rows,)
    spec = pl.BlockSpec((tile_rows, lanes), lambda r: (r, 0))
    sds = jax.ShapeDtypeStruct((rows, lanes), jnp.float32)

    kernel = functools.partial(_lsnn_kernel, dt=dt, **p)

    z, v_new, i_new, b_new = pl.pallas_call(
        kernel,
        out_shape=(sds, sds, sds, sds),
        grid=grid,
        in_specs=(spec, spec, spec, spec),
        out_specs=(spec, spec, spec, spec),
        # State update in place: v -> v_new, i -> i_new, b -> b_new.
        input_output_aliases={1: 1, 2: 2, 3: 3},
        compiler_params=pltpu.CompilerParams(
            dimension_semantics=("parallel",),
            vmem_limit_bytes=32 * 1024 * 1024),
    )(x2, v2, i2, b2)

    def unflatten(a):
        a = a.reshape(-1)
        if pad_amt:
            a = a[:total]
        return a.reshape(orig_shape)

    return unflatten(z), (unflatten(v_new), unflatten(i_new), unflatten(b_new))


# --------------------------- pure-JAX reference --------------------------------
def _lsnn_reference(x, v, i, b, *, p=LSNN_PARAMS, dt=DT):
    dv = dt * p["tau_mem_inv"] * ((p["v_leak"] - v) + i)
    v_decayed = v + dv
    di = -dt * p["tau_syn_inv"] * i
    i_decayed = i + di
    db = dt * p["tau_adapt_inv"] * (p["v_th"] - b)
    b_decayed = b + db
    z = (v_decayed - b_decayed > 0.0).astype(v.dtype)
    v_new = (1.0 - z) * v_decayed + z * p["v_reset"]
    i_new = i_decayed + x
    b_new = b_decayed + z * (p["tau_adapt_inv"] * p["beta"])
    return z, (v_new, i_new, b_new)


if __name__ == "__main__":
    # Module configured with shape=(4, 16, 16); batch=2 -> input (2, 4, 16, 16).
    key = jax.random.PRNGKey(0)
    kx, kv, ki, kb = jax.random.split(key, 4)
    shape = (2, 4, 16, 16)

    x = (jax.random.uniform(kx, shape) > 0.7).astype(jnp.float32)  # input spikes
    v = jax.random.normal(kv, shape, dtype=jnp.float32)            # membrane volt.
    i = jax.random.normal(ki, shape, dtype=jnp.float32)            # syn. current
    b = jax.random.uniform(kb, shape, dtype=jnp.float32)           # threshold adapt

    # Reference first (robust against in-place state aliasing in the kernel).
    z_r, (v_r, i_r, b_r) = _lsnn_reference(x, v, i, b)
    z_r, v_r, i_r, b_r = map(np.asarray, (z_r, v_r, i_r, b_r))

    z, (v_new, i_new, b_new) = lsnn_feed_forward_step(x, v, i, b)
    jax.block_until_ready((z, v_new, i_new, b_new))

    np.testing.assert_allclose(np.asarray(z), z_r, atol=1e-6)
    np.testing.assert_allclose(np.asarray(v_new), v_r, atol=1e-6)
    np.testing.assert_allclose(np.asarray(i_new), i_r, atol=1e-6)
    np.testing.assert_allclose(np.asarray(b_new), b_r, atol=1e-6)

    print("KERNEL_OK")
</pallas_src>

<mosaic_0001>
module attributes {stable_mosaic.version = 11 : i64} {
  func.func @_lsnn_kernel(%arg0: i32, %arg1: memref<4x512xf32, #tpu.memory_space<vmem>>, %arg2: memref<4x512xf32, #tpu.memory_space<vmem>>, %arg3: memref<4x512xf32, #tpu.memory_space<vmem>>, %arg4: memref<4x512xf32, #tpu.memory_space<vmem>>, %arg5: memref<4x512xf32, #tpu.memory_space<vmem>>, %arg6: memref<4x512xf32, #tpu.memory_space<vmem>>, %arg7: memref<4x512xf32, #tpu.memory_space<vmem>>, %arg8: memref<4x512xf32, #tpu.memory_space<vmem>>) attributes {dimension_semantics = [#tpu.dimension_semantics<parallel>], iteration_bounds = array<i64: 1>, scalar_prefetch = 0 : i64, scratch_operands = 0 : i64, tpu.core_type = #tpu.core_type<tc>, window_params = [{transform_indices = @transform_0, window_bounds = array<i64: 4, 512>}, {transform_indices = @transform_1, window_bounds = array<i64: 4, 512>}, {transform_indices = @transform_2, window_bounds = array<i64: 4, 512>}, {transform_indices = @transform_3, window_bounds = array<i64: 4, 512>}, {transform_indices = @transform_4, window_bounds = array<i64: 4, 512>}, {transform_indices = @transform_5, window_bounds = array<i64: 4, 512>}, {transform_indices = @transform_6, window_bounds = array<i64: 4, 512>}, {transform_indices = @transform_7, window_bounds = array<i64: 4, 512>}]} {
    %c0 = arith.constant 0 : index
    %c0_0 = arith.constant 0 : index
    %0 = vector.load %arg1[%c0, %c0_0] : memref<4x512xf32, #tpu.memory_space<vmem>>, vector<4x512xf32>
    %c0_1 = arith.constant 0 : index
    %c0_2 = arith.constant 0 : index
    %1 = vector.load %arg2[%c0_1, %c0_2] : memref<4x512xf32, #tpu.memory_space<vmem>>, vector<4x512xf32>
    %c0_3 = arith.constant 0 : index
    %c0_4 = arith.constant 0 : index
    %2 = vector.load %arg3[%c0_3, %c0_4] : memref<4x512xf32, #tpu.memory_space<vmem>>, vector<4x512xf32>
    %c0_5 = arith.constant 0 : index
    %c0_6 = arith.constant 0 : index
    %3 = vector.load %arg4[%c0_5, %c0_6] : memref<4x512xf32, #tpu.memory_space<vmem>>, vector<4x512xf32>
    %cst = arith.constant 0.000000e+00 : f32
    %4 = vector.broadcast %cst : f32 to vector<4x512xf32>
    %5 = arith.subf %4, %1 : vector<4x512xf32>
    %6 = arith.addf %5, %2 : vector<4x512xf32>
    %cst_7 = arith.constant 1.000000e-01 : f32
    %7 = vector.broadcast %cst_7 : f32 to vector<4x512xf32>
    %8 = arith.mulf %7, %6 : vector<4x512xf32>
    %9 = arith.addf %1, %8 : vector<4x512xf32>
    %cst_8 = arith.constant 2.000000e-01 : f32
    %10 = vector.broadcast %cst_8 : f32 to vector<4x512xf32>
    %11 = arith.mulf %10, %2 : vector<4x512xf32>
    %12 = arith.subf %2, %11 : vector<4x512xf32>
    %cst_9 = arith.constant 1.000000e+00 : f32
    %13 = vector.broadcast %cst_9 : f32 to vector<4x512xf32>
    %14 = arith.subf %13, %3 : vector<4x512xf32>
    %cst_10 = arith.constant 1.42857141E-6 : f32
    %15 = vector.broadcast %cst_10 : f32 to vector<4x512xf32>
    %16 = arith.mulf %15, %14 : vector<4x512xf32>
    %17 = arith.addf %3, %16 : vector<4x512xf32>
    %18 = arith.subf %9, %17 : vector<4x512xf32>
    %cst_11 = arith.constant 0.000000e+00 : f32
    %19 = vector.broadcast %cst_11 : f32 to vector<4x512xf32>
    %20 = arith.cmpf ogt, %18, %19 : vector<4x512xf32>
    %21 = arith.extui %20 : vector<4x512xi1> to vector<4x512xi32>
    %22 = arith.sitofp %21 : vector<4x512xi32> to vector<4x512xf32>
    %c0_12 = arith.constant 0 : index
    %c0_13 = arith.constant 0 : index
    %23 = vector.load %arg5[%c0_12, %c0_13] : memref<4x512xf32, #tpu.memory_space<vmem>>, vector<4x512xf32>
    tpu.vector_store %arg5[%c0_12, %c0_13], %22 {strides = array<i32>} : memref<4x512xf32, #tpu.memory_space<vmem>>, vector<4x512xf32>,
    %cst_14 = arith.constant 0.000000e+00 : f32
    %24 = vector.broadcast %cst_14 : f32 to vector<4x512xf32>
    %25 = arith.select %20, %24, %9 : vector<4x512xi1>, vector<4x512xf32>
    %c0_15 = arith.constant 0 : index
    %c0_16 = arith.constant 0 : index
    %26 = vector.load %arg6[%c0_15, %c0_16] : memref<4x512xf32, #tpu.memory_space<vmem>>, vector<4x512xf32>
    tpu.vector_store %arg6[%c0_15, %c0_16], %25 {strides = array<i32>} : memref<4x512xf32, #tpu.memory_space<vmem>>, vector<4x512xf32>,
    %27 = arith.addf %12, %0 : vector<4x512xf32>
    %c0_17 = arith.constant 0 : index
    %c0_18 = arith.constant 0 : index
    %28 = vector.load %arg7[%c0_17, %c0_18] : memref<4x512xf32, #tpu.memory_space<vmem>>, vector<4x512xf32>
    tpu.vector_store %arg7[%c0_17, %c0_18], %27 {strides = array<i32>} : memref<4x512xf32, #tpu.memory_space<vmem>>, vector<4x512xf32>,
    %cst_19 = arith.constant 0.00257142866 : f32
    %29 = vector.broadcast %cst_19 : f32 to vector<4x512xf32>
    %30 = arith.addf %17, %29 : vector<4x512xf32>
    %31 = arith.select %20, %30, %17 : vector<4x512xi1>, vector<4x512xf32>
    %c0_20 = arith.constant 0 : index
    %c0_21 = arith.constant 0 : index
    %32 = vector.load %arg8[%c0_20, %c0_21] : memref<4x512xf32, #tpu.memory_space<vmem>>, vector<4x512xf32>
    tpu.vector_store %arg8[%c0_20, %c0_21], %31 {strides = array<i32>} : memref<4x512xf32, #tpu.memory_space<vmem>>, vector<4x512xf32>,
    return
  }
  func.func @transform_0(%arg0: i32) -> (i32, i32) {
    %c0_i32 = arith.constant 0 : i32
    %c0_i32_0 = arith.constant 0 : i32
    return %arg0, %c0_i32 : i32, i32
  }
  func.func @transform_1(%arg0: i32) -> (i32, i32) {
    %c0_i32 = arith.constant 0 : i32
    %c0_i32_0 = arith.constant 0 : i32
    return %arg0, %c0_i32 : i32, i32
  }
  func.func @transform_2(%arg0: i32) -> (i32, i32) {
    %c0_i32 = arith.constant 0 : i32
    %c0_i32_0 = arith.constant 0 : i32
    return %arg0, %c0_i32 : i32, i32
  }
  func.func @transform_3(%arg0: i32) -> (i32, i32) {
    %c0_i32 = arith.constant 0 : i32
    %c0_i32_0 = arith.constant 0 : i32
    return %arg0, %c0_i32 : i32, i32
  }
  func.func @transform_4(%arg0: i32) -> (i32, i32) {
    %c0_i32 = arith.constant 0 : i32
    %c0_i32_0 = arith.constant 0 : i32
    return %arg0, %c0_i32 : i32, i32
  }
  func.func @transform_5(%arg0: i32) -> (i32, i32) {
    %c0_i32 = arith.constant 0 : i32
    %c0_i32_0 = arith.constant 0 : i32
    return %arg0, %c0_i32 : i32, i32
  }
  func.func @transform_6(%arg0: i32) -> (i32, i32) {
    %c0_i32 = arith.constant 0 : i32
    %c0_i32_0 = arith.constant 0 : i32
    return %arg0, %c0_i32 : i32, i32
  }
  func.func @transform_7(%arg0: i32) -> (i32, i32) {
    %c0_i32 = arith.constant 0 : i32
    %c0_i32_0 = arith.constant 0 : i32
    return %arg0, %c0_i32 : i32, i32
  }
}

</mosaic_0001>

<llo_original>
// kernel: tpu_custom_call.1
$region0: #{tpu_custom_call.1}
  #allocation0 [shape = 'u32[]', space=smem, size = 0x4, offset = 0x4, fixed_abs, tag = 'smem constant byte address 0x4 - core index']
  #allocation1 [shape = 'u32[144,128]{1,0:T(1,128)}', space=vmem, size = 0x12000, scoped, tag = 'internal scratch']
  %s0 = inlined_call_operand.vmem [shape: f32[4,512], index: 0, kind: input, shape index: {}]
  %s1 = inlined_call_operand.hbm [shape: f32[4,512], index: 1, kind: input, shape index: {}, may-alias: {1,5}]
  %s2 = inlined_call_operand.hbm [shape: f32[4,512], index: 2, kind: input, shape index: {}, may-alias: {2,6}]
  %s3 = inlined_call_operand.hbm [shape: f32[4,512], index: 3, kind: input, shape index: {}, may-alias: {3,7}]
  %s4 = inlined_call_operand.hbm [shape: f32[4,512], index: 4, kind: output, shape index: {0}]
  %s5 = inlined_call_operand.hbm [shape: f32[4,512], index: 5, kind: output, shape index: {1}, may-alias: {1,5}]
  %s6 = inlined_call_operand.hbm [shape: f32[4,512], index: 6, kind: output, shape index: {2}, may-alias: {2,6}]
  %s7 = inlined_call_operand.hbm [shape: f32[4,512], index: 7, kind: output, shape index: {3}, may-alias: {3,7}]
  %8 = xla_tuple %s4, %s5, %s6, %s7
  %s9 = sld [smem:[#allocation0]]
  $region62: #{tpu_custom_call.1} parent=0
    _
  %s11 = ssub.s32 1, %s9
  %s12 = scalar_select 0, %s11, %s9
  $region1: #{tpu_custom_call.1} parent=0
    #allocation2 [shape = 'u8[8192]{0}', space=vmem, size = 0x2000, scoped, tag = 'input window, operand 1, single buffered']
    #allocation3 [shape = 's32[1]{0}', space=sflag, size = 0x4, scoped, tag = 'scoped memory for tpu_custom_call.1']
    #allocation4 [shape = 's32[1]{0}', space=sflag, size = 0x4, scoped, tag = 'scoped memory for tpu_custom_call.1']
    #allocation5 [shape = 'u8[8192]{0}', space=vmem, size = 0x2000, scoped, tag = 'input window, operand 2, single buffered']
    #allocation6 [shape = 's32[1]{0}', space=sflag, size = 0x4, scoped, tag = 'scoped memory for tpu_custom_call.1']
    #allocation7 [shape = 'u8[8192]{0}', space=vmem, size = 0x2000, scoped, tag = 'input window, operand 3, single buffered']
    #allocation8 [shape = 'u8[8192]{0}', space=vmem, size = 0x2000, scoped, tag = 'output window, operand 0, single buffered']
    #allocation9 [shape = 'u8[8192]{0}', space=vmem, size = 0x2000, scoped, tag = 'output window, operand 1, single buffered']
    #allocation10 [shape = 's32[1]{0}', space=sflag, size = 0x4, scoped, tag = 'scoped memory for tpu_custom_call.1']
    #allocation11 [shape = 'u8[8192]{0}', space=vmem, size = 0x2000, scoped, tag = 'output window, operand 2, single buffered']
    #allocation12 [shape = 'u8[8192]{0}', space=vmem, size = 0x2000, scoped, tag = 'output window, operand 3, single buffered']
    #allocation13 [shape = 's32[1]{0}', space=sflag, size = 0x4, scoped, tag = 'scoped memory for tpu_custom_call.1']
    %13 = vsyncpa [#allocation3], 0
    %14 = vsyncpa [#allocation6], 0
    %15 = vsyncpa [#allocation4], 0
    %16 = vsyncpa [#allocation10], 0
    %17 = vsyncpa [#allocation13], 0
    // Predicated region
    $region2: #{tpu_custom_call.1} parent=1 // pred_check
      _
    $region3: #{tpu_custom_call.1} parent=1 // pred_check_branch
      %19 = sbr.rel (0) target = $region5
    $region4: #{tpu_custom_call.1} parent=1 // pred_region
      _
    $region5: #{tpu_custom_call.1} parent=1 // pred_fallthru
      _
    // Predicated region
    $region6: #{tpu_custom_call.1} parent=1 // pred_check
      _
    $region7: #{tpu_custom_call.1} parent=1 // pred_check_branch
      %21 = sbr.rel (0) target = $region9
    $region8: #{tpu_custom_call.1} parent=1 // pred_region
      %s23 = ssub.s32 256, 256
      %24 = vsyncadd [#allocation3], %s23
      %s26 = sshll.u32 [#allocation2], 4
      %s27 = int_to_ptr.vmem [resolvable:$true] %s26
      %29 = dma.hbm_to_vmem [thread:$0]  %s1, 256, %s27, [#allocation3]
    $region9: #{tpu_custom_call.1} parent=1 // pred_fallthru
      _
    // Predicated region
    $region10: #{tpu_custom_call.1} parent=1 // pred_check
      _
    $region11: #{tpu_custom_call.1} parent=1 // pred_check_branch
      %31 = sbr.rel (0) target = $region13
    $region12: #{tpu_custom_call.1} parent=1 // pred_region
      %s33 = ssub.s32 256, 256
      %34 = vsyncadd [#allocation6], %s33
      %s36 = sshll.u32 [#allocation5], 4
      %s37 = int_to_ptr.vmem [resolvable:$true] %s36
      %39 = dma.hbm_to_vmem [thread:$0]  %s2, 256, %s37, [#allocation6]
    $region13: #{tpu_custom_call.1} parent=1 // pred_fallthru
      _
    // Predicated region
    $region14: #{tpu_custom_call.1} parent=1 // pred_check
      _
    $region15: #{tpu_custom_call.1} parent=1 // pred_check_branch
      %41 = sbr.rel (0) target = $region17
    $region16: #{tpu_custom_call.1} parent=1 // pred_region
      %s43 = ssub.s32 256, 256
      %44 = vsyncadd [#allocation6], %s43
      %s46 = sshll.u32 [#allocation7], 4
      %s47 = int_to_ptr.vmem [resolvable:$true] %s46
      %49 = dma.hbm_to_vmem [thread:$0]  %s3, 256, %s47, [#allocation6]
    $region17: #{tpu_custom_call.1} parent=1 // pred_fallthru
      _
    // Predicated region
    $region18: #{tpu_custom_call.1} parent=1 // pred_check
      _
    $region19: #{tpu_custom_call.1} parent=1 // pred_check_branch
      %51 = sbr.rel (0) target = $region21
    $region20: #{tpu_custom_call.1} parent=1 // pred_region
      %52 = dma.done [#allocation3], 256
    $region21: #{tpu_custom_call.1} parent=1 // pred_fallthru
      _
    // Predicated region
    $region22: #{tpu_custom_call.1} parent=1 // pred_check
      _
    $region23: #{tpu_custom_call.1} parent=1 // pred_check_branch
      %54 = sbr.rel (0) target = $region25
    $region24: #{tpu_custom_call.1} parent=1 // pred_region
      %55 = dma.done [#allocation6], 256
    $region25: #{tpu_custom_call.1} parent=1 // pred_fallthru
      _
    // Predicated region
    $region26: #{tpu_custom_call.1} parent=1 // pred_check
      _
    $region27: #{tpu_custom_call.1} parent=1 // pred_check_branch
      %57 = sbr.rel (0) target = $region29
    $region28: #{tpu_custom_call.1} parent=1 // pred_region
      %58 = dma.done [#allocation6], 256
    $region29: #{tpu_custom_call.1} parent=1 // pred_fallthru
      _
    %v59 = vld [vmem:[%s0] sm:$0xff]
    %v60 = vld [vmem:[%s0 + $0x8] sm:$0xff]
    %v61 = vld [vmem:[#allocation2] sm:$0xff]
    %v62 = vld [vmem:[#allocation2 + $0x8] sm:$0xff]
    %v63 = vld [vmem:[#allocation5] sm:$0xff]
    %v64 = vld [vmem:[#allocation5 + $0x8] sm:$0xff]
    %v65 = vld [vmem:[#allocation7] sm:$0xff]
    %v66 = vld [vmem:[#allocation7 + $0x8] sm:$0xff]
    %v67 = vsub.f32 0.0, %v61
    %v68 = vsub.f32 0.0, %v62
    %v69 = vadd.f32 %v67, %v63
    %v70 = vadd.f32 %v68, %v64
    %v71 = vmul.f32 %v69, 0.1
    %v72 = vmul.f32 %v70, 0.1
    %v73 = vadd.f32 %v61, %v71
    %v74 = vadd.f32 %v62, %v72
    %v75 = vmul.f32 %v63, 0.2
    %v76 = vmul.f32 %v64, 0.2
    %v77 = vsub.f32 %v63, %v75
    %v78 = vsub.f32 %v64, %v76
    %v79 = vsub.f32 1.0, %v65
    %v80 = vsub.f32 1.0, %v66
    %v81 = vmul.f32 %v79, 1.4285714e-06
    %v82 = vmul.f32 %v80, 1.4285714e-06
    %v83 = vadd.f32 %v65, %v81
    %v84 = vadd.f32 %v66, %v82
    %v85 = vsub.f32 %v73, %v83
    %v86 = vsub.f32 %v74, %v84
    %vm87 = vcmp.gt.f32.partialorder %v85, 0.0
    %vm88 = vcmp.gt.f32.partialorder %v86, 0.0
    %v89 = vsel %vm87, 1, 0
    %v90 = vsel %vm88, 1, 0
    %v91 = vcvt.s32.f32 %v89
    %v92 = vcvt.s32.f32 %v90
    %93 = vst [vmem:[#allocation8] sm:$0xff] %v91
    %94 = vst [vmem:[#allocation8 + $0x8] sm:$0xff] %v92
    %v95 = vsel %vm87, 0.0, %v73
    %v96 = vsel %vm88, 0.0, %v74
    %97 = vst [vmem:[#allocation9] sm:$0xff] %v95
    %98 = vst [vmem:[#allocation9 + $0x8] sm:$0xff] %v96
    %v99 = vadd.f32 %v77, %v59
    %v100 = vadd.f32 %v78, %v60
    %101 = vst [vmem:[#allocation11] sm:$0xff] %v99
    %102 = vst [vmem:[#allocation11 + $0x8] sm:$0xff] %v100
    %v103 = vadd.f32 %v83, 0.0025714287
    %v104 = vadd.f32 %v84, 0.0025714287
    %v105 = vsel %vm87, %v103, %v83
    %v106 = vsel %vm88, %v104, %v84
    %107 = vst [vmem:[#allocation12] sm:$0xff] %v105
    %108 = vst [vmem:[#allocation12 + $0x8] sm:$0xff] %v106
    // Predicated region
    $region30: #{tpu_custom_call.1} parent=1 // pred_check
      _
    $region31: #{tpu_custom_call.1} parent=1 // pred_check_branch
      %110 = sbr.rel (0) target = $region33
    $region32: #{tpu_custom_call.1} parent=1 // pred_region
      %s112 = ssub.s32 256, 256
      %113 = vsyncadd [#allocation4], %s112
      %s115 = sshll.u32 [#allocation8], 4
      %s116 = int_to_ptr.vmem [resolvable:$true] %s115
      %118 = dma.vmem_to_hbm [thread:$0]  %s116, 256, %s4, [#allocation4]
    $region33: #{tpu_custom_call.1} parent=1 // pred_fallthru
      _
    // Predicated region
    $region34: #{tpu_custom_call.1} parent=1 // pred_check
      _
    $region35: #{tpu_custom_call.1} parent=1 // pred_check_branch
      %120 = sbr.rel (0) target = $region37
    $region36: #{tpu_custom_call.1} parent=1 // pred_region
      %s122 = ssub.s32 256, 256
      %123 = vsyncadd [#allocation10], %s122
      %s125 = sshll.u32 [#allocation9], 4
      %s126 = int_to_ptr.vmem [resolvable:$true] %s125
      %128 = dma.vmem_to_hbm [thread:$0]  %s126, 256, %s5, [#allocation10]
    $region37: #{tpu_custom_call.1} parent=1 // pred_fallthru
      _
    // Predicated region
    $region38: #{tpu_custom_call.1} parent=1 // pred_check
      _
    $region39: #{tpu_custom_call.1} parent=1 // pred_check_branch
      %130 = sbr.rel (0) target = $region41
    $region40: #{tpu_custom_call.1} parent=1 // pred_region
      %s132 = ssub.s32 256, 256
      %133 = vsyncadd [#allocation10], %s132
      %s135 = sshll.u32 [#allocation11], 4
      %s136 = int_to_ptr.vmem [resolvable:$true] %s135
      %138 = dma.vmem_to_hbm [thread:$0]  %s136, 256, %s6, [#allocation10]
    $region41: #{tpu_custom_call.1} parent=1 // pred_fallthru
      _
    // Predicated region
    $region42: #{tpu_custom_call.1} parent=1 // pred_check
      _
    $region43: #{tpu_custom_call.1} parent=1 // pred_check_branch
      %140 = sbr.rel (0) target = $region45
    $region44: #{tpu_custom_call.1} parent=1 // pred_region
      %s142 = ssub.s32 256, 256
      %143 = vsyncadd [#allocation13], %s142
      %s145 = sshll.u32 [#allocation12], 4
      %s146 = int_to_ptr.vmem [resolvable:$true] %s145
      %148 = dma.vmem_to_hbm [thread:$0]  %s146, 256, %s7, [#allocation13]
    $region45: #{tpu_custom_call.1} parent=1 // pred_fallthru
      _
    // Predicated region
    $region46: #{tpu_custom_call.1} parent=1 // pred_check
      _
    $region47: #{tpu_custom_call.1} parent=1 // pred_check_branch
      %150 = sbr.rel (0) target = $region49
    $region48: #{tpu_custom_call.1} parent=1 // pred_region
      %151 = dma.done [#allocation4], 256
    $region49: #{tpu_custom_call.1} parent=1 // pred_fallthru
      _
    // Predicated region
    $region50: #{tpu_custom_call.1} parent=1 // pred_check
      _
    $region51: #{tpu_custom_call.1} parent=1 // pred_check_branch
      %153 = sbr.rel (0) target = $region53
    $region52: #{tpu_custom_call.1} parent=1 // pred_region
      %154 = dma.done [#allocation10], 256
    $region53: #{tpu_custom_call.1} parent=1 // pred_fallthru
      _
    // Predicated region
    $region54: #{tpu_custom_call.1} parent=1 // pred_check
      _
    $region55: #{tpu_custom_call.1} parent=1 // pred_check_branch
      %156 = sbr.rel (0) target = $region57
    $region56: #{tpu_custom_call.1} parent=1 // pred_region
      %157 = dma.done [#allocation10], 256
    $region57: #{tpu_custom_call.1} parent=1 // pred_fallthru
      _
    // Predicated region
    $region58: #{tpu_custom_call.1} parent=1 // pred_check
      _
    $region59: #{tpu_custom_call.1} parent=1 // pred_check_branch
      %159 = sbr.rel (0) target = $region61
    $region60: #{tpu_custom_call.1} parent=1 // pred_region
      %160 = dma.done [#allocation13], 256
    $region61: #{tpu_custom_call.1} parent=1 // pred_fallthru
      _
    %161 = vsyncpa [#allocation3], 1
    %162 = vsyncpa [#allocation6], 1
    %163 = vsyncpa [#allocation4], 1
    %164 = vsyncpa [#allocation10], 1
    %165 = vsyncpa [#allocation13], 1

</llo_original>
